<compile_context>
chip_gen: v7x
topology: tpu7x:2x2x1
jax: 0.10.0
libtpu: 0.0.40
codegen_flags: <defaults>
</compile_context>

<pallas_src>
import functools

import jax
import jax.numpy as jnp
from jax.experimental import pallas as pl
from jax.experimental.pallas import tpu as pltpu


_HEADER = 16  # ones rows that fold each conv's bias into its MXU matmul


@functools.lru_cache(maxsize=None)
def _roll_is_np_convention():
    """Pin down pltpu.roll's rotation direction once (multi-vreg probe, cached)."""
    def k(x_ref, o_ref):
        o_ref[...] = pltpu.roll(x_ref[...], 5, axis=1)

    x = jnp.tile(jnp.arange(256, dtype=jnp.float32)[None, :], (8, 1))
    y = pl.pallas_call(k, out_shape=jax.ShapeDtypeStruct((8, 256), jnp.float32))(x)
    # np.roll convention (out[i] == in[i-5]) -> y[0,0] == 251 ; opposite -> 5.
    return bool(float(y[0, 0]) > 128.0)


def _make_rdb_kernel(C, G0, G, W, HW, HW_pad, col_offsets, compute_dtype, roll_np):
    f32 = jnp.float32
    cd = jnp.dtype(compute_dtype)
    padded = HW_pad != HW

    def rot_amount(s):
        # static lane rotation so that rotated[:, p] == blk[:, (p + s) % HW_pad]
        return (-s if roll_np else s) % HW_pad

    def kernel(x_ref, wconv_ref, wlff_ref, blff_ref, masks_ref, out_ref,
               slab_ref, lff_ref):

        def append_block(blk_f32, blk_cd, base, sz):
            # Write the 9 rotated/masked tap copies of this channel block into
            # slab rows [base, base + 9*sz).  Rolls/masks in f32, stored in cd.
            for dy in range(3):
                for dx in range(3):
                    t = dy * 3 + dx
                    s = (dy - 1) * W + (dx - 1)
                    if s == 0 and not padded:
                        v = blk_cd                    # center tap: mask is all ones
                    else:
                        shifted = blk_f32 if s == 0 else pltpu.roll(
                            blk_f32, rot_amount(s), axis=1)
                        v = (shifted * masks_ref[pl.ds(t, 1), :]).astype(cd)
                    slab_ref[pl.ds(base + t * sz, sz), :] = v

        x_f32 = x_ref[0].astype(f32)                  # (G0, HW_pad), stays resident
        x_cd = x_f32.astype(cd)

        # ones header rows: each conv's bias lives in weight column 0.
        slab_ref[pl.ds(0, _HEADER), :] = jnp.ones((_HEADER, HW_pad), cd)

        # block 0 of the growing feature map = the RDB input itself
        append_block(x_f32, x_cd, _HEADER, G0)

        # LFF (1x1 conv) accumulated incrementally, block by block
        lff_ref[...] = jnp.dot(wlff_ref[:, pl.ds(0, G0)], x_cd,
                               preferred_element_type=f32)

        for i in range(C):
            c_in = G0 + i * G
            k_i = _HEADER + 9 * c_in
            # 3x3 conv over all resident blocks: ONE MXU matmul, bias folded in.
            acc = jnp.dot(wconv_ref[:, pl.ds(col_offsets[i], k_i)],
                          slab_ref[pl.ds(0, k_i), :],
                          preferred_element_type=f32)          # (G, HW_pad) f32
            # SiLU: a * sigmoid(a); sigmoid via one EUP tanh op.
            y = acc * (0.5 * jnp.tanh(0.5 * acc) + 0.5)
            y_cd = y.astype(cd)

            # this block's LFF contribution (the channel "concat" is implicit)
            lff_ref[...] += jnp.dot(wlff_ref[:, pl.ds(G0 + i * G, G)], y_cd,
                                    preferred_element_type=f32)

            # append its 9 tap rows only if another conv layer will consume it
            if i + 1 < C:
                append_block(y, y_cd, _HEADER + 9 * (G0 + i * G), G)

        out_ref[0] = (lff_ref[...] + blff_ref[...] + x_f32).astype(out_ref.dtype)

    return kernel


def rdb_forward(x_nchw, conv_weights, conv_biases, lff_weight, lff_bias, *,
                compute_dtype=jnp.bfloat16):
    """RDB forward: x (N, G0, H, W) -> (N, G0, H, W), one fused Pallas kernel."""
    N, G0, H, W = x_nchw.shape
    C = len(conv_weights)
    G = conv_weights[0].shape[0]
    HW = H * W
    HW_pad = ((HW + 127) // 128) * 128
    t_total = G0 + C * G
    c_in_max = G0 + (C - 1) * G
    cd = jnp.dtype(compute_dtype)
    f32 = jnp.float32

    roll_np = _roll_is_np_convention()

    # NCHW -> (N, channels, H*W); pad the lane axis to a multiple of 128.
    x_flat = x_nchw.reshape(N, G0, HW)
    if HW_pad != HW:
        x_flat = jnp.pad(x_flat, ((0, 0), (0, 0), (0, HW_pad - HW)))

    # Pack all C conv weights + biases into one (G, cols) array whose column
    # order matches the slab row order: [ones-header|bias][block][tap][channel].
    blocks, col_offsets, col = [], [], 0
    for i, (w, b) in enumerate(zip(conv_weights, conv_biases)):
        cols = [jnp.zeros((G, _HEADER), f32).at[:, 0].set(b)]      # bias header
        for j in range(i + 1):
            lo, sz = (0, G0) if j == 0 else (G0 + (j - 1) * G, G)
            wb = w[:, lo:lo + sz, :, :]                            # (G, sz, 3, 3)
            cols.append(jnp.transpose(wb, (0, 2, 3, 1)).reshape(G, 9 * sz))
        wi = jnp.concatenate(cols, axis=1)                         # (G, HEADER+9*c_in)
        k_pad = ((wi.shape[1] + 127) // 128) * 128                 # 128-aligned offsets
        wi = jnp.pad(wi, ((0, 0), (0, k_pad - wi.shape[1])))
        col_offsets.append(col)
        col += k_pad
        blocks.append(wi)
    w_conv = jnp.concatenate(blocks, axis=1).astype(cd)            # (G, cols)

    w_lff = lff_weight.reshape(G0, t_total).astype(cd)
    b_lff = lff_bias.reshape(G0, 1).astype(f32)

    # 3x3 boundary masks over the flattened (padded) H*W lane axis, 1 row/tap.
    hh = jnp.arange(H).reshape(H, 1)
    ww = jnp.arange(W).reshape(1, W)
    rows = []
    for dy in range(3):
        for dx in range(3):
            ok = ((hh + dy - 1 >= 0) & (hh + dy - 1 < H) &
                  (ww + dx - 1 >= 0) & (ww + dx - 1 < W))
            rows.append(ok.reshape(HW))
    masks = jnp.stack(rows, axis=0).astype(f32)                    # (9, HW)
    if HW_pad != HW:
        masks = jnp.pad(masks, ((0, 0), (0, HW_pad - HW)))

    kernel = _make_rdb_kernel(C, G0, G, W, HW, HW_pad, tuple(col_offsets),
                              compute_dtype, roll_np)

    # VMEM budget derived from the actual resident working set (not hard-coded).
    slab_rows = _HEADER + 9 * c_in_max
    xbytes = jnp.dtype(x_nchw.dtype).itemsize
    needed = (slab_rows * HW_pad * cd.itemsize                  # im2col slab
              + G0 * HW_pad * 4                                 # LFF accumulator
              + 2 * 2 * G0 * HW_pad * xbytes                    # double-buffered x / out
              + 2 * (w_conv.size + w_lff.size) * cd.itemsize
              + 2 * (masks.size + b_lff.size) * 4)
    vmem_limit = int(min(max(needed * 5 // 4 + (4 << 20), 32 << 20), 100 << 20))

    out = pl.pallas_call(
        kernel,
        out_shape=jax.ShapeDtypeStruct((N, G0, HW_pad), x_nchw.dtype),
        grid_spec=pltpu.PrefetchScalarGridSpec(
            num_scalar_prefetch=0,
            grid=(N,),
            in_specs=[
                pl.BlockSpec((1, G0, HW_pad), lambda n: (n, 0, 0)),
                pl.BlockSpec(w_conv.shape, lambda n: (0, 0)),
                pl.BlockSpec(w_lff.shape, lambda n: (0, 0)),
                pl.BlockSpec(b_lff.shape, lambda n: (0, 0)),
                pl.BlockSpec(masks.shape, lambda n: (0, 0)),
            ],
            out_specs=pl.BlockSpec((1, G0, HW_pad), lambda n: (n, 0, 0)),
            scratch_shapes=[
                pltpu.VMEM((slab_rows, HW_pad), compute_dtype),  # resident im2col slab
                pltpu.VMEM((G0, HW_pad), jnp.float32),           # LFF accumulator
            ]),
        compiler_params=pltpu.CompilerParams(
            dimension_semantics=("parallel",),
            vmem_limit_bytes=vmem_limit),
    )(x_flat, w_conv, w_lff, b_lff, masks)

    if HW_pad != HW:
        out = out[:, :, :HW]
    return out.reshape(N, G0, H, W)


def _reference_rdb(x, conv_weights, conv_biases, lff_weight, lff_bias):
    feat = x
    for w, b in zip(conv_weights, conv_biases):
        y = jax.lax.conv_general_dilated(
            feat, w, window_strides=(1, 1), padding="SAME",
            dimension_numbers=("NCHW", "OIHW", "NCHW"),
            precision=jax.lax.Precision.HIGHEST)
        y = y + b[None, :, None, None]
        y = y * jax.nn.sigmoid(y)
        feat = jnp.concatenate([feat, y], axis=1)
    lff = jax.lax.conv_general_dilated(
        feat, lff_weight, window_strides=(1, 1), padding="SAME",
        dimension_numbers=("NCHW", "OIHW", "NCHW"),
        precision=jax.lax.Precision.HIGHEST)
    return lff + lff_bias[None, :, None, None] + x


if __name__ == "__main__":
    key = jax.random.PRNGKey(0)
    N, G0, C, G, H, W = 2, 16, 3, 16, 16, 16

    keys = jax.random.split(key, 1 + 2 * C + 2)
    x = jax.random.normal(keys[0], (N, G0, H, W), dtype=jnp.float32)
    conv_ws, conv_bs = [], []
    for i in range(C):
        c_in = G0 + i * G
        conv_ws.append(0.1 * jax.random.normal(keys[1 + 2 * i], (G, c_in, 3, 3), jnp.float32))
        conv_bs.append(0.1 * jax.random.normal(keys[2 + 2 * i], (G,), jnp.float32))
    lff_w = 0.1 * jax.random.normal(keys[1 + 2 * C], (G0, G0 + C * G, 1, 1), jnp.float32)
    lff_b = 0.1 * jax.random.normal(keys[2 + 2 * C], (G0,), jnp.float32)

    ref = _reference_rdb(x, conv_ws, conv_bs, lff_w, lff_b)

    # f32 MXU operands (tight check)
    out = jax.block_until_ready(
        rdb_forward(x, conv_ws, conv_bs, lff_w, lff_b, compute_dtype=jnp.float32))
    assert out.shape == (N, G0, H, W), out.shape
    assert jnp.allclose(out, ref, atol=2e-3, rtol=2e-3), "f32 kernel mismatch vs reference"

    # bf16 MXU operands, f32 accumulation (default path) -> loose check
    out_bf16 = jax.block_until_ready(
        rdb_forward(x, conv_ws, conv_bs, lff_w, lff_b, compute_dtype=jnp.bfloat16))
    assert jnp.allclose(out_bf16, ref, atol=2e-1, rtol=1e-1), "bf16 kernel mismatch vs reference"

    print("KERNEL_OK")
</pallas_src>

<mosaic_0001>
module attributes {stable_mosaic.version = 11 : i64} {
  func.func @k(%arg0: memref<8x256xf32, #tpu.memory_space<vmem>>, %arg1: memref<8x256xf32, #tpu.memory_space<vmem>>) attributes {dimension_semantics = [], scalar_prefetch = 0 : i64, scratch_operands = 0 : i64, tpu.core_type = #tpu.core_type<tc>} {
    %c0 = arith.constant 0 : index
    %c0_0 = arith.constant 0 : index
    %0 = vector.load %arg0[%c0, %c0_0] : memref<8x256xf32, #tpu.memory_space<vmem>>, vector<8x256xf32>
    %c5_i32 = arith.constant 5 : i32
    %1 = tpu.dynamic_rotate %0 by %c5_i32 dim 1 : vector<8x256xf32>, i32 -> vector<8x256xf32>
    %c0_1 = arith.constant 0 : index
    %c0_2 = arith.constant 0 : index
    %2 = vector.load %arg1[%c0_1, %c0_2] : memref<8x256xf32, #tpu.memory_space<vmem>>, vector<8x256xf32>
    tpu.vector_store %arg1[%c0_1, %c0_2], %1 {strides = array<i32>} : memref<8x256xf32, #tpu.memory_space<vmem>>, vector<8x256xf32>,
    return
  }
}

</mosaic_0001>

<llo_original>
// kernel: tpu_custom_call.1
$region0: #{tpu_custom_call.1}
  #allocation0 [shape = 'u32[]', space=smem, size = 0x4, offset = 0x4, fixed_abs, tag = 'smem constant byte address 0x4 - core index']
  #allocation1 [shape = 'u32[144,128]{1,0:T(1,128)}', space=vmem, size = 0x12000, scoped, tag = 'internal scratch']
  %s0 = inlined_call_operand.hbm [shape: f32[8,256], index: 0, kind: input, shape index: {}]
  %s1 = inlined_call_operand.hbm [shape: f32[8,256], index: 1, kind: output, shape index: {}]
  %s2 = sld [smem:[#allocation0]]
  $region18: #{tpu_custom_call.1} parent=0
    _
  %s4 = ssub.s32 1, %s2
  %s5 = scalar_select 0, %s4, %s2
  $region1: #{tpu_custom_call.1} parent=0
    #allocation2 [shape = 'u8[8192]{0}', space=vmem, size = 0x2000, scoped, tag = 'input window, operand 0, single buffered']
    #allocation3 [shape = 's32[1]{0}', space=sflag, size = 0x4, scoped, tag = 'scoped memory for tpu_custom_call.1']
    #allocation4 [shape = 's32[1]{0}', space=sflag, size = 0x4, scoped, tag = 'scoped memory for tpu_custom_call.1']
    #allocation5 [shape = 'u8[8192]{0}', space=vmem, size = 0x2000, scoped, tag = 'output window, operand 0, single buffered']
    %6 = vsyncpa [#allocation3], 0
    %7 = vsyncpa [#allocation4], 0
    // Predicated region
    $region2: #{tpu_custom_call.1} parent=1 // pred_check
      _
    $region3: #{tpu_custom_call.1} parent=1 // pred_check_branch
      %9 = sbr.rel (0) target = $region5
    $region4: #{tpu_custom_call.1} parent=1 // pred_region
      %s11 = ssub.s32 256, 256
      %12 = vsyncadd [#allocation3], %s11
      %s14 = sshll.u32 [#allocation2], 4
      %s15 = int_to_ptr.vmem [resolvable:$true] %s14
      %17 = dma.hbm_to_vmem [thread:$0]  %s0, 256, %s15, [#allocation3]
    $region5: #{tpu_custom_call.1} parent=1 // pred_fallthru
      _
    // Predicated region
    $region6: #{tpu_custom_call.1} parent=1 // pred_check
      _
    $region7: #{tpu_custom_call.1} parent=1 // pred_check_branch
      %19 = sbr.rel (0) target = $region9
    $region8: #{tpu_custom_call.1} parent=1 // pred_region
      %20 = dma.done [#allocation3], 256
    $region9: #{tpu_custom_call.1} parent=1 // pred_fallthru
      _
    %v21 = vld [vmem:[#allocation2] sm:$0xff]
    %v22 = vld [vmem:[#allocation2 + $0x8] sm:$0xff]
    %23 = vrot.lane.b32.xlu0 %v21, 5
    %v24 = vpop.permute.xlu0 %23
    %25 = vrot.lane.b32.xlu0 %v22, 5
    %v26 = vpop.permute.xlu0 %25
    %v27 = vlaneseq
    %v28 = vand.u32 %v27, 127
    %vm29 = vcmp.lt.s32.totalorder %v28, 5
    %v30 = vsel %vm29, %v24, %v26
    %v31 = vsel %vm29, %v26, %v24
    %32 = vst [vmem:[#allocation5] sm:$0xff] %v31
    %33 = vst [vmem:[#allocation5 + $0x8] sm:$0xff] %v30
    // Predicated region
    $region10: #{tpu_custom_call.1} parent=1 // pred_check
      _
    $region11: #{tpu_custom_call.1} parent=1 // pred_check_branch
      %35 = sbr.rel (0) target = $region13
    $region12: #{tpu_custom_call.1} parent=1 // pred_region
      %s37 = ssub.s32 256, 256
      %38 = vsyncadd [#allocation4], %s37
      %s40 = sshll.u32 [#allocation5], 4
      %s41 = int_to_ptr.vmem [resolvable:$true] %s40
      %43 = dma.vmem_to_hbm [thread:$0]  %s41, 256, %s1, [#allocation4]
    $region13: #{tpu_custom_call.1} parent=1 // pred_fallthru
      _
    // Predicated region
    $region14: #{tpu_custom_call.1} parent=1 // pred_check
      _
    $region15: #{tpu_custom_call.1} parent=1 // pred_check_branch
      %45 = sbr.rel (0) target = $region17
    $region16: #{tpu_custom_call.1} parent=1 // pred_region
      %46 = dma.done [#allocation4], 256
    $region17: #{tpu_custom_call.1} parent=1 // pred_fallthru
      _
    %47 = vsyncpa [#allocation3], 1
    %48 = vsyncpa [#allocation4], 1

</llo_original>
